<compile_context>
chip_gen: v7x
topology: tpu7x:2x2x1
jax: 0.10.0
libtpu: 0.0.40
codegen_flags: <defaults>
</compile_context>

<pallas_src>
import functools

import jax
import jax.numpy as jnp
from jax import lax
from jax.experimental import pallas as pl
from jax.experimental.pallas import tpu as pltpu

_BATCH_ALIGN = 16     # bf16 packs 16 sublanes per vreg
_ROW_CHUNK = 128      # in-kernel sub-chunk (bounds f32 intermediate live range)
_MAX_TILE_B = 512     # batch rows per grid step


def _round_up(n, m):
    return ((n + m - 1) // m) * m


def _pad_hidden(d):
    # <=128: one lane group; >128: 256-align for full-width MXU passes on
    # v6e/v7x (256 is still a 128 multiple, so harmless on v5e).
    return _round_up(d, 128) if d <= 128 else _round_up(d, 256)


# ----------------------------------------------------------------------------
# Pallas kernel: fused Linear -> ReLU -> Linear on one batch tile.
#   x_ref  : (TILE_B, D_in)        input dtype (cast to bf16 in-kernel)
#   w1_ref : (D_in,  D_hid_pad)    bf16  (VMEM-resident across grid steps)
#   b1_ref : (1, D_hid_pad)        f32
#   w2_ref : (D_hid_pad, D_out)    bf16  (VMEM-resident across grid steps)
#   b2_ref : (1, D_out)            f32
#   o_ref  : (TILE_B, D_out)       f32
# The batch tile is processed in `row_chunk`-row sub-chunks so the f32
# intermediate h stays small even for 512-row tiles.
# ----------------------------------------------------------------------------
def _mlp_fused_kernel(row_chunk, n_chunks, x_ref, w1_ref, b1_ref, w2_ref,
                      b2_ref, o_ref):
    b1 = b1_ref[...]
    b2 = b2_ref[...]

    def _compute_rows(xb):
        # MXU matmul 1: bf16 inputs, f32 accumulation.
        h = jnp.dot(xb, w1_ref[...], preferred_element_type=jnp.float32)
        # Bias + ReLU epilogue in f32 on the VPU (once per chunk).
        h = jnp.maximum(h + b1, 0.0)
        # MXU matmul 2: cast activations back to bf16.
        y = jnp.dot(h.astype(jnp.bfloat16), w2_ref[...],
                    preferred_element_type=jnp.float32)
        return (y + b2).astype(o_ref.dtype)

    if n_chunks == 1:
        o_ref[...] = _compute_rows(x_ref[...].astype(jnp.bfloat16))
    else:
        def _chunk(c, carry):
            r0 = pl.multiple_of(c * row_chunk, row_chunk)
            xb = x_ref[pl.ds(r0, row_chunk), :].astype(jnp.bfloat16)
            o_ref[pl.ds(r0, row_chunk), :] = _compute_rows(xb)
            return carry

        lax.fori_loop(0, n_chunks, _chunk, 0, unroll=True)


def mlp_forward_pallas(x, w1_pad, b1_pad, w2_pad, b2_pad, d_out):
    """Fused MLP forward as a batch-tiled Pallas TPU kernel.

    `w*_pad` / `b*_pad` are pre-padded (hidden dim only) and pre-cast once at
    module init.  `x` is used in its native dtype — only the batch dim is
    padded here; the output is sliced back to (B, d_out) on the batch dim only.
    """
    B, D_in = x.shape
    D_hid_pad = w1_pad.shape[1]
    assert w2_pad.shape == (D_hid_pad, d_out)

    # Batch tiling: 16-row alignment (bf16 packing); tiles are whole multiples
    # of the in-kernel row chunk so the chunk loop is exact.
    B_pad = _round_up(B, _BATCH_ALIGN)
    if B_pad > _ROW_CHUNK:
        B_pad = _round_up(B_pad, _ROW_CHUNK)
        tile_b = min(B_pad, _MAX_TILE_B)
        B_pad = _round_up(B_pad, tile_b)
    else:
        tile_b = B_pad
    row_chunk = min(tile_b, _ROW_CHUNK)
    n_chunks = tile_b // row_chunk

    x_p = jnp.pad(x, ((0, B_pad - B), (0, 0))) if B_pad > B else x

    # Explicit scoped-VMEM budget: 2x double-buffered activation/output stream
    # + 2x resident params + intermediate headroom (defaults are 16/32 MiB).
    stream_bytes = tile_b * (D_in * x.dtype.itemsize + d_out * 4)
    param_bytes = (w1_pad.size * w1_pad.dtype.itemsize + b1_pad.size * 4
                   + w2_pad.size * w2_pad.dtype.itemsize + b2_pad.size * 4)
    scratch_bytes = 4 * row_chunk * D_hid_pad * 4
    vmem_limit = int(min(64 * 2**20,
                         max(32 * 2**20,
                             2 * (2 * stream_bytes + 2 * param_bytes
                                  + scratch_bytes))))

    kernel = functools.partial(_mlp_fused_kernel, row_chunk, n_chunks)

    out = pl.pallas_call(
        kernel,
        out_shape=jax.ShapeDtypeStruct((B_pad, d_out), jnp.float32),
        grid_spec=pltpu.PrefetchScalarGridSpec(
            num_scalar_prefetch=0,
            grid=(B_pad // tile_b,),
            in_specs=[
                # Activations stream per batch tile (double-buffered by Pallas).
                pl.BlockSpec((tile_b, D_in), lambda i: (i, 0)),
                # Params: constant block index -> DMA'd once, stay in VMEM.
                pl.BlockSpec((D_in, D_hid_pad), lambda i: (0, 0)),
                pl.BlockSpec((1, D_hid_pad), lambda i: (0, 0)),
                pl.BlockSpec((D_hid_pad, d_out), lambda i: (0, 0)),
                pl.BlockSpec((1, d_out), lambda i: (0, 0)),
            ],
            out_specs=pl.BlockSpec((tile_b, d_out), lambda i: (i, 0)),
        ),
        compiler_params=pltpu.CompilerParams(
            # Batch tiles are independent -> shard across v7x's 2 TensorCores.
            dimension_semantics=("parallel",),
            vmem_limit_bytes=vmem_limit),
    )(x_p, w1_pad, b1_pad, w2_pad, b2_pad)

    return out if B_pad == B else out[:B]


# ----------------------------------------------------------------------------
# The wrapped "original module": a tiny 2-layer MLP with deterministic params.
# Raw f32 params are kept for state_dict(); the hidden dim is zero-padded once
# (math stays exact) and matmul operands are pre-cast to bf16 for the MXU.
# ----------------------------------------------------------------------------
class _InnerMLP:
    def __init__(self, key, d_in=32, d_hid=64, d_out=32, dtype=jnp.float32):
        k1, k2, k3, k4 = jax.random.split(key, 4)
        scale1 = 1.0 / jnp.sqrt(jnp.asarray(d_in, dtype))
        scale2 = 1.0 / jnp.sqrt(jnp.asarray(d_hid, dtype))
        self._params = {
            "fc1.weight": jax.random.normal(k1, (d_in, d_hid), dtype) * scale1,
            "fc1.bias":   jax.random.normal(k2, (1, d_hid), dtype) * 0.01,
            "fc2.weight": jax.random.normal(k3, (d_hid, d_out), dtype) * scale2,
            "fc2.bias":   jax.random.normal(k4, (1, d_out), dtype) * 0.01,
        }
        self.training = True
        self._d_out = d_out

        # Pad only the internal hidden dim (never touches per-forward HBM
        # activation traffic); one-time cost at init.
        d_hid_p = _pad_hidden(d_hid)
        p = self._params
        self._w1_pad = jnp.pad(
            p["fc1.weight"], ((0, 0), (0, d_hid_p - d_hid))).astype(jnp.bfloat16)
        self._b1_pad = jnp.pad(p["fc1.bias"], ((0, 0), (0, d_hid_p - d_hid)))
        self._w2_pad = jnp.pad(
            p["fc2.weight"], ((0, d_hid_p - d_hid), (0, 0))).astype(jnp.bfloat16)
        self._b2_pad = p["fc2.bias"]

    def forward(self, x):
        return mlp_forward_pallas(x, self._w1_pad, self._b1_pad,
                                  self._w2_pad, self._b2_pad, self._d_out)

    def state_dict(self):
        return dict(self._params)

    def parameters(self):
        yield from self._params.values()

    def named_parameters(self, prefix=""):
        for name, p in self._params.items():
            yield prefix + name, p


# ----------------------------------------------------------------------------
# ORTModule analogue: pure delegation wrapper (mirrors the PyTorch class).
# All forward compute goes through the inner module -> Pallas kernel.
# ----------------------------------------------------------------------------
class ORTModule:
    def __init__(self, module):
        # TODO(synk): ONNX export, register_custom_op, _FlattenedModule and
        # GraphExecutionManagerFactory / ORT InferenceSession have no Pallas
        # equivalent; the "execution manager" here is the JAX/Pallas forward.
        self._original_module = module
        self._flattened_module = module

        def _forward(self, *inputs, **kwargs):
            return self._execution_manager(self._is_training())(*inputs, **kwargs)

        self.forward = functools.partial(_forward, self)

    def _execution_manager(self, is_training):
        return self._flattened_module.forward

    def _is_training(self):
        return self._flattened_module.training

    # Delegation API, mirroring the torch class.
    def state_dict(self):
        return self._original_module.state_dict()

    def parameters(self):
        yield from self._original_module.parameters()

    def named_parameters(self, prefix=""):
        yield from self._original_module.named_parameters(prefix=prefix)

    def _replicate_for_data_parallel(self):
        raise NotImplementedError(
            "ORTModule is not compatible with torch.nn.DataParallel. "
            "Please use torch.nn.parallel.DistributedDataParallel instead.")

    def __call__(self, *inputs, **kwargs):
        return self.forward(*inputs, **kwargs)


if __name__ == "__main__":
    key = jax.random.PRNGKey(0)
    k_param, k_x = jax.random.split(key)

    B, D_IN, D_HID, D_OUT = 8, 32, 64, 32
    inner = _InnerMLP(k_param, d_in=D_IN, d_hid=D_HID, d_out=D_OUT)
    ort_module = ORTModule(inner)

    x = jax.random.normal(k_x, (B, D_IN), jnp.float32)

    y = ort_module(x)
    jax.block_until_ready(y)

    # Reference check against plain JAX f32 forward of the wrapped module.
    # Tolerance reflects bf16 MXU inputs with f32 accumulation.
    p = inner.state_dict()
    ref = (jnp.maximum(x @ p["fc1.weight"] + p["fc1.bias"], 0.0)
           @ p["fc2.weight"] + p["fc2.bias"])
    assert y.shape == (B, D_OUT)
    assert jnp.allclose(y, ref, atol=5e-2, rtol=5e-2), \
        f"max abs err {jnp.max(jnp.abs(y - ref))}"

    print("KERNEL_OK")
</pallas_src>

<mosaic_0001>
module attributes {stable_mosaic.version = 11 : i64} {
  func.func @_mlp_fused_kernel(%arg0: i32, %arg1: memref<16x32xf32, #tpu.memory_space<vmem>>, %arg2: memref<32x128xbf16, #tpu.memory_space<vmem>>, %arg3: memref<1x128xf32, #tpu.memory_space<vmem>>, %arg4: memref<128x32xbf16, #tpu.memory_space<vmem>>, %arg5: memref<1x32xf32, #tpu.memory_space<vmem>>, %arg6: memref<16x32xf32, #tpu.memory_space<vmem>>) attributes {dimension_semantics = [#tpu.dimension_semantics<parallel>], iteration_bounds = array<i64: 1>, scalar_prefetch = 0 : i64, scratch_operands = 0 : i64, tpu.core_type = #tpu.core_type<tc>, window_params = [{transform_indices = @transform_0, window_bounds = array<i64: 16, 32>}, {pipeline_mode = #tpu.pipeline_mode<synchronous>, transform_indices = @transform_1, window_bounds = array<i64: 32, 128>}, {pipeline_mode = #tpu.pipeline_mode<synchronous>, transform_indices = @transform_2, window_bounds = array<i64: 1, 128>}, {pipeline_mode = #tpu.pipeline_mode<synchronous>, transform_indices = @transform_3, window_bounds = array<i64: 128, 32>}, {pipeline_mode = #tpu.pipeline_mode<synchronous>, transform_indices = @transform_4, window_bounds = array<i64: 1, 32>}, {transform_indices = @transform_5, window_bounds = array<i64: 16, 32>}]} {
    %c0 = arith.constant 0 : index
    %c0_0 = arith.constant 0 : index
    %0 = vector.load %arg3[%c0, %c0_0] : memref<1x128xf32, #tpu.memory_space<vmem>>, vector<1x128xf32>
    %c0_1 = arith.constant 0 : index
    %c0_2 = arith.constant 0 : index
    %1 = vector.load %arg5[%c0_1, %c0_2] : memref<1x32xf32, #tpu.memory_space<vmem>>, vector<1x32xf32>
    %c0_3 = arith.constant 0 : index
    %c0_4 = arith.constant 0 : index
    %2 = vector.load %arg1[%c0_3, %c0_4] : memref<16x32xf32, #tpu.memory_space<vmem>>, vector<16x32xf32>
    %3 = arith.truncf %2 : vector<16x32xf32> to vector<16x32xbf16>
    %c0_5 = arith.constant 0 : index
    %c0_6 = arith.constant 0 : index
    %4 = vector.load %arg2[%c0_5, %c0_6] : memref<32x128xbf16, #tpu.memory_space<vmem>>, vector<32x128xbf16>
    %cst = arith.constant dense<0.000000e+00> : vector<16x128xf32>
    %5 = tpu.matmul %3, %4, %cst {dimension_numbers = #tpu.dot_dimension_numbers<[1], [0], [0], [1], [0, 0, 1, 1], [], []>} : vector<16x32xbf16>, vector<32x128xbf16>, vector<16x128xf32> -> vector<16x128xf32>
    %6 = vector.broadcast %0 : vector<1x128xf32> to vector<16x128xf32>
    %7 = arith.addf %5, %6 : vector<16x128xf32>
    %cst_7 = arith.constant 0.000000e+00 : f32
    %8 = vector.broadcast %cst_7 : f32 to vector<16x128xf32>
    %9 = arith.maximumf %7, %8 : vector<16x128xf32>
    %10 = arith.truncf %9 : vector<16x128xf32> to vector<16x128xbf16>
    %c0_8 = arith.constant 0 : index
    %c0_9 = arith.constant 0 : index
    %11 = vector.load %arg4[%c0_8, %c0_9] : memref<128x32xbf16, #tpu.memory_space<vmem>>, vector<128x32xbf16>
    %cst_10 = arith.constant dense<0.000000e+00> : vector<16x32xf32>
    %12 = tpu.matmul %10, %11, %cst_10 {dimension_numbers = #tpu.dot_dimension_numbers<[1], [0], [0], [1], [0, 0, 1, 1], [], []>} : vector<16x128xbf16>, vector<128x32xbf16>, vector<16x32xf32> -> vector<16x32xf32>
    %13 = vector.broadcast %1 : vector<1x32xf32> to vector<16x32xf32>
    %14 = arith.addf %12, %13 : vector<16x32xf32>
    %c0_11 = arith.constant 0 : index
    %c0_12 = arith.constant 0 : index
    %15 = vector.load %arg6[%c0_11, %c0_12] : memref<16x32xf32, #tpu.memory_space<vmem>>, vector<16x32xf32>
    tpu.vector_store %arg6[%c0_11, %c0_12], %14 {strides = array<i32>} : memref<16x32xf32, #tpu.memory_space<vmem>>, vector<16x32xf32>,
    return
  }
  func.func @transform_0(%arg0: i32) -> (i32, i32) {
    %c0_i32 = arith.constant 0 : i32
    %c0_i32_0 = arith.constant 0 : i32
    return %arg0, %c0_i32 : i32, i32
  }
  func.func @transform_1(%arg0: i32) -> (i32, i32) {
    %c0_i32 = arith.constant 0 : i32
    %c0_i32_0 = arith.constant 0 : i32
    %c0_i32_1 = arith.constant 0 : i32
    return %c0_i32, %c0_i32_0 : i32, i32
  }
  func.func @transform_2(%arg0: i32) -> (i32, i32) {
    %c0_i32 = arith.constant 0 : i32
    %c0_i32_0 = arith.constant 0 : i32
    %c0_i32_1 = arith.constant 0 : i32
    return %c0_i32, %c0_i32_0 : i32, i32
  }
  func.func @transform_3(%arg0: i32) -> (i32, i32) {
    %c0_i32 = arith.constant 0 : i32
    %c0_i32_0 = arith.constant 0 : i32
    %c0_i32_1 = arith.constant 0 : i32
    return %c0_i32, %c0_i32_0 : i32, i32
  }
  func.func @transform_4(%arg0: i32) -> (i32, i32) {
    %c0_i32 = arith.constant 0 : i32
    %c0_i32_0 = arith.constant 0 : i32
    %c0_i32_1 = arith.constant 0 : i32
    return %c0_i32, %c0_i32_0 : i32, i32
  }
  func.func @transform_5(%arg0: i32) -> (i32, i32) {
    %c0_i32 = arith.constant 0 : i32
    %c0_i32_0 = arith.constant 0 : i32
    return %arg0, %c0_i32 : i32, i32
  }
}

</mosaic_0001>

<llo_original>
// kernel: tpu_custom_call.1
$region0: #{tpu_custom_call.1}
  #allocation0 [shape = 'u32[]', space=smem, size = 0x4, offset = 0x4, fixed_abs, tag = 'smem constant byte address 0x4 - core index']
  #allocation1 [shape = 'u32[144,128]{1,0:T(1,128)}', space=vmem, size = 0x12000, scoped, tag = 'internal scratch']
  %s0 = inlined_call_operand.vmem [shape: f32[16,32], index: 0, kind: input, shape index: {}]
  %s1 = inlined_call_operand.vmem [shape: bf16[32,128], index: 1, kind: input, shape index: {}]
  %s2 = inlined_call_operand.vmem [shape: f32[1,128], index: 2, kind: input, shape index: {}]
  %s3 = inlined_call_operand.vmem [shape: bf16[128,32], index: 3, kind: input, shape index: {}]
  %s4 = inlined_call_operand.vmem [shape: f32[1,32], index: 4, kind: input, shape index: {}]
  %s5 = inlined_call_operand.hbm [shape: f32[16,32], index: 5, kind: output, shape index: {}]
  %s6 = sld [smem:[#allocation0]]
  $region30: #{tpu_custom_call.1} parent=0
    _
  %s8 = ssub.s32 1, %s6
  %s9 = scalar_select 0, %s8, %s6
  $region1: #{tpu_custom_call.1} parent=0
    #allocation2 [shape = 'u8[8192]{0}', space=vmem, size = 0x2000, scoped, tag = 'output window, operand 0, single buffered']
    #allocation3 [shape = 's32[1]{0}', space=sflag, size = 0x4, scoped, tag = 'scoped memory for tpu_custom_call.1']
    %10 = vsyncpa [#allocation3], 0
    // Predicated region
    $region2: #{tpu_custom_call.1} parent=1 // pred_check
      _
    $region3: #{tpu_custom_call.1} parent=1 // pred_check_branch
      %12 = sbr.rel (0) target = $region5
    $region4: #{tpu_custom_call.1} parent=1 // pred_region
      _
    $region5: #{tpu_custom_call.1} parent=1 // pred_fallthru
      _
    // Predicated region
    $region6: #{tpu_custom_call.1} parent=1 // pred_check
      _
    $region7: #{tpu_custom_call.1} parent=1 // pred_check_branch
      %14 = sbr.rel (0) target = $region9
    $region8: #{tpu_custom_call.1} parent=1 // pred_region
      _
    $region9: #{tpu_custom_call.1} parent=1 // pred_fallthru
      _
    // Predicated region
    $region10: #{tpu_custom_call.1} parent=1 // pred_check
      _
    $region11: #{tpu_custom_call.1} parent=1 // pred_check_branch
      %16 = sbr.rel (0) target = $region13
    $region12: #{tpu_custom_call.1} parent=1 // pred_region
      _
    $region13: #{tpu_custom_call.1} parent=1 // pred_fallthru
      _
    // Predicated region
    $region14: #{tpu_custom_call.1} parent=1 // pred_check
      _
    $region15: #{tpu_custom_call.1} parent=1 // pred_check_branch
      %18 = sbr.rel (0) target = $region17
    $region16: #{tpu_custom_call.1} parent=1 // pred_region
      _
    $region17: #{tpu_custom_call.1} parent=1 // pred_fallthru
      _
    // Predicated region
    $region18: #{tpu_custom_call.1} parent=1 // pred_check
      _
    $region19: #{tpu_custom_call.1} parent=1 // pred_check_branch
      %20 = sbr.rel (0) target = $region21
    $region20: #{tpu_custom_call.1} parent=1 // pred_region
      _
    $region21: #{tpu_custom_call.1} parent=1 // pred_fallthru
      _
    %v22 = vld [vmem:[%s2] sm:$0x1]
    %v23 = vld [vmem:[%s4] sm:$0x1]
    %v24 = vld [vmem:[%s0] sm:$0xff]
    %v25 = vld [vmem:[%s0 + $0x8] sm:$0xff]
    %v26 = vpack.c.bf16 %v25, %v24
    %v27 = vld [vmem:[%s1] sm:$0xf]
    %v28 = vld [vmem:[%s1 + $0x4] sm:$0xf]
    %v29 = vld [vmem:[%s1 + $0x8] sm:$0xf]
    %v30 = vld [vmem:[%s1 + $0xc] sm:$0xf]
    %v32 = vlaneseq
    %v33 = vshrl.u32 %v32, 7
    %v34 = vsub.s32 0, %v33
    %v35 = vrot.slane %v22, %v34
    %v41 = vunpack.c.l.b16 %v27
    %v42 = vunpack.c.l.b16 %v28
    %v43 = vunpack.c.l.b16 %v29
    %v44 = vunpack.c.l.b16 %v30
    %v45 = vpack.c.b16 %v42, %v41
    %v46 = vpack.c.b16 %v44, %v43
    %vm49 = vcmask 261120
    %v51 = vsel %vm49, %v26, 0
    %53 = vmatprep.subr.bf16.mxu0 0
    %54 = vmatpush1.bf16.msra.mxu0 %v45
    %55 = vmatprep.subr.bf16.mxu0 0
    %56 = vmatpush1.bf16.msra.mxu0 %v46
    %57 = vmatprep.subr.bf16.mxu0 0
    %58 = vmatpush1.bf16.msra.mxu0 0
    %59 = vmatprep.subr.bf16.mxu0 0
    %60 = vmatpush1.bf16.msra.mxu0 0
    %61 = vmatprep.subr.bf16.mxu0 0
    %62 = vmatpush1.bf16.msra.mxu0 0
    %63 = vmatprep.subr.bf16.mxu0 0
    %64 = vmatpush1.bf16.msra.mxu0 0
    %65 = vmatprep.subr.bf16.mxu0 0
    %66 = vmatpush1.bf16.msra.mxu0 0
    %67 = vmatprep.subr.bf16.mxu0 0
    %68 = vmatpush1.bf16.msra.mxu0 0
    %69 = vmatprep.subr.bf16.mxu0 0
    %70 = vmatpush1.bf16.msra.mxu0 0
    %71 = vmatprep.subr.bf16.mxu0 0
    %72 = vmatpush1.bf16.msra.mxu0 0
    %73 = vmatprep.subr.bf16.mxu0 0
    %74 = vmatpush1.bf16.msra.mxu0 0
    %75 = vmatprep.subr.bf16.mxu0 0
    %76 = vmatpush1.bf16.msra.mxu0 0
    %77 = vmatprep.subr.bf16.mxu0 0
    %78 = vmatpush1.bf16.msra.mxu0 0
    %79 = vmatprep.subr.bf16.mxu0 0
    %80 = vmatpush1.bf16.msra.mxu0 0
    %81 = vmatprep.subr.bf16.mxu0 0
    %82 = vmatpush1.bf16.msra.mxu0 0
    %83 = vmatprep.subr.bf16.mxu0 0
    %84 = vmatpush1.bf16.msra.mxu0 0
    %85 = vmatprep.mubr.bf16.mxu0 0
    %86 = vmatmul.mubr.bf16.gmra.mrb[0].mxu0 %v51
    %v87 = vpop.f32.mrb[0].mxu0
    %v88 = vadd.f32 %v35, %v87
    %v89 = vpop.f32.mrb[0].mxu0
    %v90 = vpop.f32.mrb[0].mxu0
    %v91 = vadd.f32 %v35, %v90
    %v92 = vpop.f32.mrb[0].mxu0
    %93 = vdwg.mxu0
    %v94 = vmax.f32 %v88, 0.0
    %v95 = vmax.f32 %v91, 0.0
    %v96 = vpack.c.bf16 %v95, %v94
    %v97 = vld [vmem:[%s3] sm:$0xf]
    %v98 = vld [vmem:[%s3 + $0x4] sm:$0xf]
    %v99 = vld [vmem:[%s3 + $0x8] sm:$0xf]
    %v100 = vld [vmem:[%s3 + $0xc] sm:$0xf]
    %v101 = vld [vmem:[%s3 + $0x10] sm:$0xf]
    %v102 = vld [vmem:[%s3 + $0x14] sm:$0xf]
    %v103 = vld [vmem:[%s3 + $0x18] sm:$0xf]
    %v104 = vld [vmem:[%s3 + $0x1c] sm:$0xf]
    %v105 = vld [vmem:[%s3 + $0x20] sm:$0xf]
    %v106 = vld [vmem:[%s3 + $0x24] sm:$0xf]
    %v107 = vld [vmem:[%s3 + $0x28] sm:$0xf]
    %v108 = vld [vmem:[%s3 + $0x2c] sm:$0xf]
    %v109 = vld [vmem:[%s3 + $0x30] sm:$0xf]
    %v110 = vld [vmem:[%s3 + $0x34] sm:$0xf]
    %v111 = vld [vmem:[%s3 + $0x38] sm:$0xf]
    %v112 = vld [vmem:[%s3 + $0x3c] sm:$0xf]
    %v114 = vlaneseq
    %v115 = vshrl.u32 %v114, 7
    %v116 = vsub.s32 0, %v115
    %v117 = vrot.slane %v23, %v116
    %v135 = vunpack.c.l.b16 %v97
    %v136 = vunpack.c.l.b16 %v98
    %v137 = vunpack.c.l.b16 %v99
    %v138 = vunpack.c.l.b16 %v100
    %v139 = vunpack.c.l.b16 %v101
    %v140 = vunpack.c.l.b16 %v102
    %v141 = vunpack.c.l.b16 %v103
    %v142 = vunpack.c.l.b16 %v104
    %v143 = vunpack.c.l.b16 %v105
    %v144 = vunpack.c.l.b16 %v106
    %v145 = vunpack.c.l.b16 %v107
    %v146 = vunpack.c.l.b16 %v108
    %v147 = vunpack.c.l.b16 %v109
    %v148 = vunpack.c.l.b16 %v110
    %v149 = vunpack.c.l.b16 %v111
    %v150 = vunpack.c.l.b16 %v112
    %v151 = vpack.c.b16 %v136, %v135
    %v152 = vpack.c.b16 %v138, %v137
    %v153 = vpack.c.b16 %v140, %v139
    %v154 = vpack.c.b16 %v142, %v141
    %v155 = vpack.c.b16 %v144, %v143
    %v156 = vpack.c.b16 %v146, %v145
    %v157 = vpack.c.b16 %v148, %v147
    %v158 = vpack.c.b16 %v150, %v149
    %167 = vmatprep.subr.bf16.mxu0 0
    %168 = vmatpush1.bf16.msra.mxu0 %v151
    %169 = vmatprep.subr.bf16.mxu0 0
    %170 = vmatpush1.bf16.msra.mxu0 %v152
    %171 = vmatprep.subr.bf16.mxu0 0
    %172 = vmatpush1.bf16.msra.mxu0 %v153
    %173 = vmatprep.subr.bf16.mxu0 0
    %174 = vmatpush1.bf16.msra.mxu0 %v154
    %175 = vmatprep.subr.bf16.mxu0 0
    %176 = vmatpush1.bf16.msra.mxu0 %v155
    %177 = vmatprep.subr.bf16.mxu0 0
    %178 = vmatpush1.bf16.msra.mxu0 %v156
    %179 = vmatprep.subr.bf16.mxu0 0
    %180 = vmatpush1.bf16.msra.mxu0 %v157
    %181 = vmatprep.subr.bf16.mxu0 0
    %182 = vmatpush1.bf16.msra.mxu0 %v158
    %183 = vmatprep.subr.bf16.mxu0 0
    %184 = vmatpush1.bf16.msra.mxu0 0
    %185 = vmatprep.subr.bf16.mxu0 0
    %186 = vmatpush1.bf16.msra.mxu0 0
    %187 = vmatprep.subr.bf16.mxu0 0
    %188 = vmatpush1.bf16.msra.mxu0 0
    %189 = vmatprep.subr.bf16.mxu0 0
    %190 = vmatpush1.bf16.msra.mxu0 0
    %191 = vmatprep.subr.bf16.mxu0 0
    %192 = vmatpush1.bf16.msra.mxu0 0
    %193 = vmatprep.subr.bf16.mxu0 0
    %194 = vmatpush1.bf16.msra.mxu0 0
    %195 = vmatprep.subr.bf16.mxu0 0
    %196 = vmatpush1.bf16.msra.mxu0 0
    %197 = vmatprep.subr.bf16.mxu0 0
    %198 = vmatpush1.bf16.msra.mxu0 0
    %199 = vmatprep.mubr.bf16.mxu0 0
    %200 = vmatmul.mubr.bf16.gmra.mrb[0].mxu0 %v96
    %v201 = vpop.f32.mrb[0].mxu0
    %v202 = vadd.f32 %v117, %v201
    %v203 = vpop.f32.mrb[0].mxu0
    %v204 = vpop.f32.mrb[0].mxu0
    %v205 = vadd.f32 %v117, %v204
    %v206 = vpop.f32.mrb[0].mxu0
    %207 = vdwg.mxu0
    %208 = vst.msk [vmem:[#allocation2] sm:$0xff] %vm49, %v202
    %209 = vst.msk [vmem:[#allocation2 + $0x8] sm:$0xff] %vm49, %v205
    // Predicated region
    $region22: #{tpu_custom_call.1} parent=1 // pred_check
      _
    $region23: #{tpu_custom_call.1} parent=1 // pred_check_branch
      %211 = sbr.rel (0) target = $region25
    $region24: #{tpu_custom_call.1} parent=1 // pred_region
      %s213 = ssub.s32 256, 256
      %214 = vsyncadd [#allocation3], %s213
      %s215 = sshll.u32 [#allocation2], 4
      %s216 = int_to_ptr.vmem [resolvable:$true] %s215
      %221 = dma.vmem_to_hbm [thread:$0]  %s216, 256, %s5, [#allocation3], 128, 128, 8
    $region25: #{tpu_custom_call.1} parent=1 // pred_fallthru
      _
    // Predicated region
    $region26: #{tpu_custom_call.1} parent=1 // pred_check
      _
    $region27: #{tpu_custom_call.1} parent=1 // pred_check_branch
      %223 = sbr.rel (0) target = $region29
    $region28: #{tpu_custom_call.1} parent=1 // pred_region
      %224 = dma.done [#allocation3], 256
    $region29: #{tpu_custom_call.1} parent=1 // pred_fallthru
      _
    %225 = vsyncpa [#allocation3], 1

</llo_original>
